<compile_context>
chip_gen: v7x
topology: tpu7x:2x2x1
jax: 0.10.0
libtpu: 0.0.40
codegen_flags: <defaults>
</compile_context>

<pallas_src>
import functools

import jax
import jax.numpy as jnp
from jax.experimental import pallas as pl
from jax.experimental.pallas import tpu as pltpu


def _sepconv_kernel(x_ref, wdw_ref, cmask_ref, b1_ref, wpw_ref, b2_ref,
                    o_ref, xpad_ref, *,
                    height, width, ksize, nb, c_in, c_out, halo):
    # x_ref    : (NB, C_in, H*W)          flattened input images
    # wdw_ref  : (C_in, K*K)              depthwise taps, BN1 scale folded in
    # cmask_ref: (K, H*W)                 column-validity masks (per kw shift)
    # b1_ref   : (C_in, 1)                folded BN1 bias
    # wpw_ref  : (C_out, C_in)            pointwise weights, BN2 scale folded in
    # b2_ref   : (C_out, 1)               folded BN2 bias
    # o_ref    : (NB, C_out, H*W)         output
    # xpad_ref : (NB, C_in, H*W + 2*halo) VMEM scratch, flat-padded images
    H, W, K = height, width, ksize
    HW = H * W
    pad = (K - 1) // 2
    pad_flat = pad * (W + 1)
    img0 = halo                       # 128-lane-aligned start of the image

    # In-kernel zero padding: only the thin strips the tap windows read are
    # zeroed (pad_flat lanes each side, every step -> megacore-safe); the
    # interior copy itself is lane-aligned and unmasked.
    xpad_ref[:, :, img0 - pad_flat:img0] = jnp.zeros(
        (nb, c_in, pad_flat), jnp.float32)
    xpad_ref[:, :, img0 + HW:img0 + HW + pad_flat] = jnp.zeros(
        (nb, c_in, pad_flat), jnp.float32)
    xpad_ref[:, :, img0:img0 + HW] = x_ref[...].astype(jnp.float32)

    # Hoist weight reads out of the tap loop.
    wdw = wdw_ref[...]                                   # (C_in, K*K) f32

    # Depthwise KxK conv: each tap is a contiguous lane-shifted window of the
    # flat-padded buffer times a per-channel scalar.  Row over/under-flow hits
    # the zero halo strips; column wrap-around is zeroed by the per-column
    # mask, applied once per kw (regrouped) instead of once per tap.
    acc = None
    for kw in range(K):
        col_sum = None
        for kh in range(K):
            start = img0 - pad_flat + kh * W + kw        # static; centre aligned
            win = xpad_ref[:, :, start:start + HW]       # (NB, C_in, HW)
            tap = wdw[:, kh * K + kw:kh * K + kw + 1]    # (C_in, 1) -> bcast
            term = win * tap
            col_sum = term if col_sum is None else col_sum + term
        if kw != pad:                                    # centre column never wraps
            col_sum = col_sum * cmask_ref[kw:kw + 1, :]  # (1, HW) -> bcast
        acc = col_sum if acc is None else acc + col_sum

    # BN1 bias + ReLU6 (scale already folded into wdw).
    y = jnp.clip(acc + b1_ref[...], 0.0, 6.0)            # (NB, C_in, HW) f32

    # Pointwise 1x1 conv (BN2 scale folded into wpw).
    wpw = wpw_ref[...]                                    # (C_out, C_in) f32
    if c_in >= 16 and c_out >= 16:
        # Production channel counts: single-pass MXU matmul, f32 accumulate.
        z = jnp.einsum("oc,ncs->nos", wpw, y,
                       preferred_element_type=jnp.float32)
    else:
        # Tiny channel counts: broadcast multiply-adds on the VPU beat a
        # sliver-shaped MXU matmul (operand relayout + result-FIFO drain).
        z = None
        for ci in range(c_in):
            term = wpw[:, ci:ci + 1] * y[:, ci:ci + 1, :]  # (NB, C_out, HW)
            z = term if z is None else z + term

    # BN2 bias + ReLU6; HW lanes -> unmasked, lane-dense stores.
    o_ref[...] = jnp.clip(z + b2_ref[...], 0.0, 6.0).astype(o_ref.dtype)


def separable_conv(x, w_dw, bn1_scale, bn1_bias, w_pw, bn2_scale, bn2_bias,
                   *, downscale=1):
    """SeparableConv forward (inference mode), matching the PyTorch module.

    x         : (N, C_in, H, W)       NCHW, PyTorch layout
    w_dw      : (C_in, 1, K, K)       depthwise conv weight (groups=C_in, no bias)
    bn1_*     : (C_in,)               folded BatchNorm2d scale / bias
    w_pw      : (C_out, C_in, 1, 1)   pointwise conv weight (no bias)
    bn2_*     : (C_out,)              folded BatchNorm2d scale / bias
    returns   : (N, C_out, H, W)
    """
    # TODO(synk): downscale (stride) > 1 not implemented; module default is 1.
    assert downscale == 1, "only stride=1 (module default) implemented"

    N, C_in, H, W = x.shape
    K = w_dw.shape[-1]
    assert K % 2 == 1, "flat-halo trick assumes odd K with symmetric padding"
    C_out = w_pw.shape[0]
    HW = H * W
    pad = (K - 1) // 2
    pad_flat = pad * (W + 1)
    HALO = -(-pad_flat // 128) * 128          # 128-lane-aligned image offset

    # One-time constant folds on weights (not activation prescaling):
    #   BN(y) = y*s + b ; conv is linear, so fold s into the conv weights.
    s1 = bn1_scale.astype(jnp.float32)
    s2 = bn2_scale.astype(jnp.float32)
    wdw = w_dw.reshape(C_in, K * K).astype(jnp.float32) * s1[:, None]
    wpw = w_pw.reshape(C_out, C_in).astype(jnp.float32) * s2[:, None]
    b1 = bn1_bias.reshape(C_in, 1).astype(jnp.float32)
    b2 = bn2_bias.reshape(C_out, 1).astype(jnp.float32)

    # Column-validity masks for the flattened tap shifts (tiny, O(K*H*W)).
    col = jnp.arange(HW, dtype=jnp.int32) % W
    cmask = jnp.stack(
        [((col + kw - pad >= 0) & (col + kw - pad < W)).astype(jnp.float32)
         for kw in range(K)], axis=0)                                 # (K, HW)

    # Only free, contiguous reshapes in the wrapper -- no transposes, no pad.
    x_flat = x.reshape(N, C_in, HW)

    # Batch several small images per grid step (amortize ~0.35us step cost and
    # fill sublanes).  NB = largest divisor of N <= 8 whose block fits a small
    # VMEM budget -> no batch-tail masking needed.
    per_img_bytes = (C_in * (HW + 2 * HALO) + (C_in + C_out) * HW) * 4
    nb_cap = max(1, min(8, (8 * 1024 * 1024) // max(1, per_img_bytes)))
    NB = 1
    for d in range(1, min(N, nb_cap) + 1):
        if N % d == 0:
            NB = d

    kernel = functools.partial(_sepconv_kernel, height=H, width=W, ksize=K,
                               nb=NB, c_in=C_in, c_out=C_out, halo=HALO)

    out_flat = pl.pallas_call(
        kernel,
        out_shape=jax.ShapeDtypeStruct((N, C_out, HW), x.dtype),
        grid=(N // NB,),
        in_specs=[
            pl.BlockSpec((NB, C_in, HW), lambda n: (n, 0, 0)),      # x
            pl.BlockSpec((C_in, K * K), lambda n: (0, 0)),          # dw w * s1
            pl.BlockSpec((K, HW), lambda n: (0, 0)),                # col masks
            pl.BlockSpec((C_in, 1), lambda n: (0, 0)),              # bn1 bias
            pl.BlockSpec((C_out, C_in), lambda n: (0, 0)),          # pw w * s2
            pl.BlockSpec((C_out, 1), lambda n: (0, 0)),             # bn2 bias
        ],
        out_specs=pl.BlockSpec((NB, C_out, HW), lambda n: (n, 0, 0)),
        scratch_shapes=[pltpu.VMEM((NB, C_in, HW + 2 * HALO), jnp.float32)],
        compiler_params=pltpu.CompilerParams(
            dimension_semantics=("parallel",),
            # Tiny footprint at these shapes; for large H*W raise toward
            # 64-100 MiB on v6e, keep well under ~48 MiB scoped on v7x (and
            # tile H*W with re-fetched halo rows there).
            vmem_limit_bytes=32 * 1024 * 1024,
        ),
    )(x_flat, wdw, cmask, b1, wpw, b2)

    return out_flat.reshape(N, C_out, H, W)


if __name__ == "__main__":
    key = jax.random.PRNGKey(0)
    kx, k1, k2, k3, k4, k5, k6, k7, k8 = jax.random.split(key, 9)

    N, C_in, C_out, H, W, K = 2, 4, 8, 16, 16, 3

    x = jax.random.normal(kx, (N, C_in, H, W), dtype=jnp.float32)
    w_dw = jax.random.normal(k1, (C_in, 1, K, K), dtype=jnp.float32) * 0.3
    w_pw = jax.random.normal(k2, (C_out, C_in, 1, 1), dtype=jnp.float32) * 0.3

    # Inference-mode BatchNorm2d parameters (gamma, beta, running mean/var),
    # folded into per-channel scale/bias:  y = x * scale + bias.
    eps = 1e-5
    g1 = 1.0 + 0.1 * jax.random.normal(k3, (C_in,), dtype=jnp.float32)
    be1 = 0.1 * jax.random.normal(k4, (C_in,), dtype=jnp.float32)
    m1 = 0.1 * jax.random.normal(k5, (C_in,), dtype=jnp.float32)
    v1 = jnp.abs(1.0 + 0.1 * jax.random.normal(k6, (C_in,), dtype=jnp.float32))
    g2 = 1.0 + 0.1 * jax.random.normal(k7, (C_out,), dtype=jnp.float32)
    be2 = 0.1 * jax.random.normal(k8, (C_out,), dtype=jnp.float32)
    m2 = jnp.zeros((C_out,), jnp.float32)
    v2 = jnp.ones((C_out,), jnp.float32)

    s1 = g1 / jnp.sqrt(v1 + eps)
    b1 = be1 - m1 * s1
    s2 = g2 / jnp.sqrt(v2 + eps)
    b2 = be2 - m2 * s2

    out = separable_conv(x, w_dw, s1, b1, w_pw, s2, b2)
    out = jax.block_until_ready(out)

    # Pure-JAX reference: XLA grouped conv + folded BN + ReLU6, full precision.
    hp = jax.lax.Precision.HIGHEST
    dw_ref = jax.lax.conv_general_dilated(
        x, w_dw, window_strides=(1, 1), padding=((1, 1), (1, 1)),
        dimension_numbers=("NCHW", "OIHW", "NCHW"),
        feature_group_count=C_in, precision=hp)
    y_ref = jnp.clip(dw_ref * s1[None, :, None, None] + b1[None, :, None, None],
                     0.0, 6.0)
    pw_ref = jax.lax.conv_general_dilated(
        y_ref, w_pw, window_strides=(1, 1), padding=((0, 0), (0, 0)),
        dimension_numbers=("NCHW", "OIHW", "NCHW"), precision=hp)
    ref = jnp.clip(pw_ref * s2[None, :, None, None] + b2[None, :, None, None],
                   0.0, 6.0)

    assert out.shape == (N, C_out, H, W)
    err = float(jnp.max(jnp.abs(out - ref)))
    assert jnp.allclose(out, ref, atol=1e-3, rtol=1e-3), f"max abs err = {err}"

    print("KERNEL_OK")
</pallas_src>

<mosaic_0001>
module attributes {stable_mosaic.version = 11 : i64} {
  func.func @_sepconv_kernel(%arg0: i32, %arg1: memref<2x4x256xf32, #tpu.memory_space<vmem>>, %arg2: memref<4x9xf32, #tpu.memory_space<vmem>>, %arg3: memref<3x256xf32, #tpu.memory_space<vmem>>, %arg4: memref<4x1xf32, #tpu.memory_space<vmem>>, %arg5: memref<8x4xf32, #tpu.memory_space<vmem>>, %arg6: memref<8x1xf32, #tpu.memory_space<vmem>>, %arg7: memref<2x8x256xf32, #tpu.memory_space<vmem>>, %arg8: memref<2x4x512xf32, #tpu.memory_space<vmem>>) attributes {dimension_semantics = [#tpu.dimension_semantics<parallel>], iteration_bounds = array<i64: 1>, scalar_prefetch = 0 : i64, scratch_operands = 1 : i64, tpu.core_type = #tpu.core_type<tc>, window_params = [{transform_indices = @transform_0, window_bounds = array<i64: 2, 4, 256>}, {pipeline_mode = #tpu.pipeline_mode<synchronous>, transform_indices = @transform_1, window_bounds = array<i64: 4, 9>}, {pipeline_mode = #tpu.pipeline_mode<synchronous>, transform_indices = @transform_2, window_bounds = array<i64: 3, 256>}, {pipeline_mode = #tpu.pipeline_mode<synchronous>, transform_indices = @transform_3, window_bounds = array<i64: 4, 1>}, {pipeline_mode = #tpu.pipeline_mode<synchronous>, transform_indices = @transform_4, window_bounds = array<i64: 8, 4>}, {pipeline_mode = #tpu.pipeline_mode<synchronous>, transform_indices = @transform_5, window_bounds = array<i64: 8, 1>}, {transform_indices = @transform_6, window_bounds = array<i64: 2, 8, 256>}]} {
    %cst = arith.constant 0.000000e+00 : f32
    %0 = vector.broadcast %cst : f32 to vector<2x4x17xf32>
    %c0 = arith.constant 0 : index
    %c0_0 = arith.constant 0 : index
    %c111 = arith.constant 111 : index
    %1 = vector.load %arg8[%c0, %c0_0, %c111] : memref<2x4x512xf32, #tpu.memory_space<vmem>>, vector<2x4x17xf32>
    tpu.vector_store %arg8[%c0, %c0_0, %c111], %0 {strides = array<i32>} : memref<2x4x512xf32, #tpu.memory_space<vmem>>, vector<2x4x17xf32>,
    %cst_1 = arith.constant 0.000000e+00 : f32
    %2 = vector.broadcast %cst_1 : f32 to vector<2x4x17xf32>
    %c0_2 = arith.constant 0 : index
    %c0_3 = arith.constant 0 : index
    %c384 = arith.constant 384 : index
    %3 = vector.load %arg8[%c0_2, %c0_3, %c384] : memref<2x4x512xf32, #tpu.memory_space<vmem>>, vector<2x4x17xf32>
    tpu.vector_store %arg8[%c0_2, %c0_3, %c384], %2 {strides = array<i32>} : memref<2x4x512xf32, #tpu.memory_space<vmem>>, vector<2x4x17xf32>,
    %c0_4 = arith.constant 0 : index
    %c0_5 = arith.constant 0 : index
    %c0_6 = arith.constant 0 : index
    %4 = vector.load %arg1[%c0_4, %c0_5, %c0_6] : memref<2x4x256xf32, #tpu.memory_space<vmem>>, vector<2x4x256xf32>
    %c0_7 = arith.constant 0 : index
    %c0_8 = arith.constant 0 : index
    %c128 = arith.constant 128 : index
    %5 = vector.load %arg8[%c0_7, %c0_8, %c128] : memref<2x4x512xf32, #tpu.memory_space<vmem>>, vector<2x4x256xf32>
    tpu.vector_store %arg8[%c0_7, %c0_8, %c128], %4 {strides = array<i32>} : memref<2x4x512xf32, #tpu.memory_space<vmem>>, vector<2x4x256xf32>,
    %c0_9 = arith.constant 0 : index
    %c0_10 = arith.constant 0 : index
    %6 = vector.load %arg2[%c0_9, %c0_10] : memref<4x9xf32, #tpu.memory_space<vmem>>, vector<4x9xf32>
    %c0_11 = arith.constant 0 : index
    %c0_12 = arith.constant 0 : index
    %c111_13 = arith.constant 111 : index
    %7 = vector.load %arg8[%c0_11, %c0_12, %c111_13] : memref<2x4x512xf32, #tpu.memory_space<vmem>>, vector<2x4x256xf32>
    %8 = vector.extract_strided_slice %6 {offsets = [0, 0], sizes = [4, 1], strides = [1, 1]} : vector<4x9xf32> to vector<4x1xf32>
    %9 = vector.shape_cast %8 : vector<4x1xf32> to vector<1x4x1xf32>
    %10 = vector.broadcast %9 : vector<1x4x1xf32> to vector<2x4x256xf32>
    %11 = arith.mulf %7, %10 : vector<2x4x256xf32>
    %c0_14 = arith.constant 0 : index
    %c0_15 = arith.constant 0 : index
    %c127 = arith.constant 127 : index
    %12 = vector.load %arg8[%c0_14, %c0_15, %c127] : memref<2x4x512xf32, #tpu.memory_space<vmem>>, vector<2x4x256xf32>
    %13 = vector.extract_strided_slice %6 {offsets = [0, 3], sizes = [4, 1], strides = [1, 1]} : vector<4x9xf32> to vector<4x1xf32>
    %14 = vector.shape_cast %13 : vector<4x1xf32> to vector<1x4x1xf32>
    %15 = vector.broadcast %14 : vector<1x4x1xf32> to vector<2x4x256xf32>
    %16 = arith.mulf %12, %15 : vector<2x4x256xf32>
    %17 = arith.addf %11, %16 : vector<2x4x256xf32>
    %c0_16 = arith.constant 0 : index
    %c0_17 = arith.constant 0 : index
    %c143 = arith.constant 143 : index
    %18 = vector.load %arg8[%c0_16, %c0_17, %c143] : memref<2x4x512xf32, #tpu.memory_space<vmem>>, vector<2x4x256xf32>
    %19 = vector.extract_strided_slice %6 {offsets = [0, 6], sizes = [4, 1], strides = [1, 1]} : vector<4x9xf32> to vector<4x1xf32>
    %20 = vector.shape_cast %19 : vector<4x1xf32> to vector<1x4x1xf32>
    %21 = vector.broadcast %20 : vector<1x4x1xf32> to vector<2x4x256xf32>
    %22 = arith.mulf %18, %21 : vector<2x4x256xf32>
    %23 = arith.addf %17, %22 : vector<2x4x256xf32>
    %c0_18 = arith.constant 0 : index
    %c0_19 = arith.constant 0 : index
    %24 = vector.load %arg3[%c0_18, %c0_19] : memref<3x256xf32, #tpu.memory_space<vmem>>, vector<1x256xf32>
    %25 = vector.shape_cast %24 : vector<1x256xf32> to vector<1x1x256xf32>
    %26 = vector.broadcast %25 : vector<1x1x256xf32> to vector<2x4x256xf32>
    %27 = arith.mulf %23, %26 : vector<2x4x256xf32>
    %c0_20 = arith.constant 0 : index
    %c0_21 = arith.constant 0 : index
    %c112 = arith.constant 112 : index
    %28 = vector.load %arg8[%c0_20, %c0_21, %c112] : memref<2x4x512xf32, #tpu.memory_space<vmem>>, vector<2x4x256xf32>
    %29 = vector.extract_strided_slice %6 {offsets = [0, 1], sizes = [4, 1], strides = [1, 1]} : vector<4x9xf32> to vector<4x1xf32>
    %30 = vector.shape_cast %29 : vector<4x1xf32> to vector<1x4x1xf32>
    %31 = vector.broadcast %30 : vector<1x4x1xf32> to vector<2x4x256xf32>
    %32 = arith.mulf %28, %31 : vector<2x4x256xf32>
    %c0_22 = arith.constant 0 : index
    %c0_23 = arith.constant 0 : index
    %c128_24 = arith.constant 128 : index
    %33 = vector.load %arg8[%c0_22, %c0_23, %c128_24] : memref<2x4x512xf32, #tpu.memory_space<vmem>>, vector<2x4x256xf32>
    %34 = vector.extract_strided_slice %6 {offsets = [0, 4], sizes = [4, 1], strides = [1, 1]} : vector<4x9xf32> to vector<4x1xf32>
    %35 = vector.shape_cast %34 : vector<4x1xf32> to vector<1x4x1xf32>
    %36 = vector.broadcast %35 : vector<1x4x1xf32> to vector<2x4x256xf32>
    %37 = arith.mulf %33, %36 : vector<2x4x256xf32>
    %38 = arith.addf %32, %37 : vector<2x4x256xf32>
    %c0_25 = arith.constant 0 : index
    %c0_26 = arith.constant 0 : index
    %c144 = arith.constant 144 : index
    %39 = vector.load %arg8[%c0_25, %c0_26, %c144] : memref<2x4x512xf32, #tpu.memory_space<vmem>>, vector<2x4x256xf32>
    %40 = vector.extract_strided_slice %6 {offsets = [0, 7], sizes = [4, 1], strides = [1, 1]} : vector<4x9xf32> to vector<4x1xf32>
    %41 = vector.shape_cast %40 : vector<4x1xf32> to vector<1x4x1xf32>
    %42 = vector.broadcast %41 : vector<1x4x1xf32> to vector<2x4x256xf32>
    %43 = arith.mulf %39, %42 : vector<2x4x256xf32>
    %44 = arith.addf %38, %43 : vector<2x4x256xf32>
    %45 = arith.addf %27, %44 : vector<2x4x256xf32>
    %c0_27 = arith.constant 0 : index
    %c0_28 = arith.constant 0 : index
    %c113 = arith.constant 113 : index
    %46 = vector.load %arg8[%c0_27, %c0_28, %c113] : memref<2x4x512xf32, #tpu.memory_space<vmem>>, vector<2x4x256xf32>
    %47 = vector.extract_strided_slice %6 {offsets = [0, 2], sizes = [4, 1], strides = [1, 1]} : vector<4x9xf32> to vector<4x1xf32>
    %48 = vector.shape_cast %47 : vector<4x1xf32> to vector<1x4x1xf32>
    %49 = vector.broadcast %48 : vector<1x4x1xf32> to vector<2x4x256xf32>
    %50 = arith.mulf %46, %49 : vector<2x4x256xf32>
    %c0_29 = arith.constant 0 : index
    %c0_30 = arith.constant 0 : index
    %c129 = arith.constant 129 : index
    %51 = vector.load %arg8[%c0_29, %c0_30, %c129] : memref<2x4x512xf32, #tpu.memory_space<vmem>>, vector<2x4x256xf32>
    %52 = vector.extract_strided_slice %6 {offsets = [0, 5], sizes = [4, 1], strides = [1, 1]} : vector<4x9xf32> to vector<4x1xf32>
    %53 = vector.shape_cast %52 : vector<4x1xf32> to vector<1x4x1xf32>
    %54 = vector.broadcast %53 : vector<1x4x1xf32> to vector<2x4x256xf32>
    %55 = arith.mulf %51, %54 : vector<2x4x256xf32>
    %56 = arith.addf %50, %55 : vector<2x4x256xf32>
    %c0_31 = arith.constant 0 : index
    %c0_32 = arith.constant 0 : index
    %c145 = arith.constant 145 : index
    %57 = vector.load %arg8[%c0_31, %c0_32, %c145] : memref<2x4x512xf32, #tpu.memory_space<vmem>>, vector<2x4x256xf32>
    %58 = vector.extract_strided_slice %6 {offsets = [0, 8], sizes = [4, 1], strides = [1, 1]} : vector<4x9xf32> to vector<4x1xf32>
    %59 = vector.shape_cast %58 : vector<4x1xf32> to vector<1x4x1xf32>
    %60 = vector.broadcast %59 : vector<1x4x1xf32> to vector<2x4x256xf32>
    %61 = arith.mulf %57, %60 : vector<2x4x256xf32>
    %62 = arith.addf %56, %61 : vector<2x4x256xf32>
    %c2 = arith.constant 2 : index
    %c0_33 = arith.constant 0 : index
    %63 = vector.load %arg3[%c2, %c0_33] : memref<3x256xf32, #tpu.memory_space<vmem>>, vector<1x256xf32>
    %64 = vector.shape_cast %63 : vector<1x256xf32> to vector<1x1x256xf32>
    %65 = vector.broadcast %64 : vector<1x1x256xf32> to vector<2x4x256xf32>
    %66 = arith.mulf %62, %65 : vector<2x4x256xf32>
    %67 = arith.addf %45, %66 : vector<2x4x256xf32>
    %c0_34 = arith.constant 0 : index
    %c0_35 = arith.constant 0 : index
    %68 = vector.load %arg4[%c0_34, %c0_35] : memref<4x1xf32, #tpu.memory_space<vmem>>, vector<4x1xf32>
    %69 = vector.shape_cast %68 : vector<4x1xf32> to vector<1x4x1xf32>
    %70 = vector.broadcast %69 : vector<1x4x1xf32> to vector<2x4x256xf32>
    %71 = arith.addf %67, %70 : vector<2x4x256xf32>
    %cst_36 = arith.constant 0.000000e+00 : f32
    %cst_37 = arith.constant 6.000000e+00 : f32
    %72 = vector.broadcast %cst_36 : f32 to vector<2x4x256xf32>
    %73 = arith.maximumf %72, %71 : vector<2x4x256xf32>
    %74 = vector.broadcast %cst_37 : f32 to vector<2x4x256xf32>
    %75 = arith.minimumf %74, %73 : vector<2x4x256xf32>
    %c0_38 = arith.constant 0 : index
    %c0_39 = arith.constant 0 : index
    %76 = vector.load %arg5[%c0_38, %c0_39] : memref<8x4xf32, #tpu.memory_space<vmem>>, vector<8x4xf32>
    %77 = vector.extract_strided_slice %76 {offsets = [0, 0], sizes = [8, 1], strides = [1, 1]} : vector<8x4xf32> to vector<8x1xf32>
    %78 = vector.extract_strided_slice %75 {offsets = [0, 0, 0], sizes = [2, 1, 256], strides = [1, 1, 1]} : vector<2x4x256xf32> to vector<2x1x256xf32>
    %79 = vector.shape_cast %77 : vector<8x1xf32> to vector<1x8x1xf32>
    %80 = vector.broadcast %79 : vector<1x8x1xf32> to vector<2x8x256xf32>
    %81 = vector.broadcast %78 : vector<2x1x256xf32> to vector<2x8x256xf32>
    %82 = arith.mulf %80, %81 : vector<2x8x256xf32>
    %83 = vector.extract_strided_slice %76 {offsets = [0, 1], sizes = [8, 1], strides = [1, 1]} : vector<8x4xf32> to vector<8x1xf32>
    %84 = vector.extract_strided_slice %75 {offsets = [0, 1, 0], sizes = [2, 1, 256], strides = [1, 1, 1]} : vector<2x4x256xf32> to vector<2x1x256xf32>
    %85 = vector.shape_cast %83 : vector<8x1xf32> to vector<1x8x1xf32>
    %86 = vector.broadcast %85 : vector<1x8x1xf32> to vector<2x8x256xf32>
    %87 = vector.broadcast %84 : vector<2x1x256xf32> to vector<2x8x256xf32>
    %88 = arith.mulf %86, %87 : vector<2x8x256xf32>
    %89 = arith.addf %82, %88 : vector<2x8x256xf32>
    %90 = vector.extract_strided_slice %76 {offsets = [0, 2], sizes = [8, 1], strides = [1, 1]} : vector<8x4xf32> to vector<8x1xf32>
    %91 = vector.extract_strided_slice %75 {offsets = [0, 2, 0], sizes = [2, 1, 256], strides = [1, 1, 1]} : vector<2x4x256xf32> to vector<2x1x256xf32>
    %92 = vector.shape_cast %90 : vector<8x1xf32> to vector<1x8x1xf32>
    %93 = vector.broadcast %92 : vector<1x8x1xf32> to vector<2x8x256xf32>
    %94 = vector.broadcast %91 : vector<2x1x256xf32> to vector<2x8x256xf32>
    %95 = arith.mulf %93, %94 : vector<2x8x256xf32>
    %96 = arith.addf %89, %95 : vector<2x8x256xf32>
    %97 = vector.extract_strided_slice %76 {offsets = [0, 3], sizes = [8, 1], strides = [1, 1]} : vector<8x4xf32> to vector<8x1xf32>
    %98 = vector.extract_strided_slice %75 {offsets = [0, 3, 0], sizes = [2, 1, 256], strides = [1, 1, 1]} : vector<2x4x256xf32> to vector<2x1x256xf32>
    %99 = vector.shape_cast %97 : vector<8x1xf32> to vector<1x8x1xf32>
    %100 = vector.broadcast %99 : vector<1x8x1xf32> to vector<2x8x256xf32>
    %101 = vector.broadcast %98 : vector<2x1x256xf32> to vector<2x8x256xf32>
    %102 = arith.mulf %100, %101 : vector<2x8x256xf32>
    %103 = arith.addf %96, %102 : vector<2x8x256xf32>
    %c0_40 = arith.constant 0 : index
    %c0_41 = arith.constant 0 : index
    %104 = vector.load %arg6[%c0_40, %c0_41] : memref<8x1xf32, #tpu.memory_space<vmem>>, vector<8x1xf32>
    %105 = vector.shape_cast %104 : vector<8x1xf32> to vector<1x8x1xf32>
    %106 = vector.broadcast %105 : vector<1x8x1xf32> to vector<2x8x256xf32>
    %107 = arith.addf %103, %106 : vector<2x8x256xf32>
    %cst_42 = arith.constant 0.000000e+00 : f32
    %cst_43 = arith.constant 6.000000e+00 : f32
    %108 = vector.broadcast %cst_42 : f32 to vector<2x8x256xf32>
    %109 = arith.maximumf %108, %107 : vector<2x8x256xf32>
    %110 = vector.broadcast %cst_43 : f32 to vector<2x8x256xf32>
    %111 = arith.minimumf %110, %109 : vector<2x8x256xf32>
    %c0_44 = arith.constant 0 : index
    %c0_45 = arith.constant 0 : index
    %c0_46 = arith.constant 0 : index
    %112 = vector.load %arg7[%c0_44, %c0_45, %c0_46] : memref<2x8x256xf32, #tpu.memory_space<vmem>>, vector<2x8x256xf32>
    tpu.vector_store %arg7[%c0_44, %c0_45, %c0_46], %111 {strides = array<i32>} : memref<2x8x256xf32, #tpu.memory_space<vmem>>, vector<2x8x256xf32>,
    return
  }
  func.func @transform_0(%arg0: i32) -> (i32, i32, i32) {
    %c0_i32 = arith.constant 0 : i32
    %c0_i32_0 = arith.constant 0 : i32
    %c0_i32_1 = arith.constant 0 : i32
    return %arg0, %c0_i32, %c0_i32_0 : i32, i32, i32
  }
  func.func @transform_1(%arg0: i32) -> (i32, i32) {
    %c0_i32 = arith.constant 0 : i32
    %c0_i32_0 = arith.constant 0 : i32
    %c0_i32_1 = arith.constant 0 : i32
    return %c0_i32, %c0_i32_0 : i32, i32
  }
  func.func @transform_2(%arg0: i32) -> (i32, i32) {
    %c0_i32 = arith.constant 0 : i32
    %c0_i32_0 = arith.constant 0 : i32
    %c0_i32_1 = arith.constant 0 : i32
    return %c0_i32, %c0_i32_0 : i32, i32
  }
  func.func @transform_3(%arg0: i32) -> (i32, i32) {
    %c0_i32 = arith.constant 0 : i32
    %c0_i32_0 = arith.constant 0 : i32
    %c0_i32_1 = arith.constant 0 : i32
    return %c0_i32, %c0_i32_0 : i32, i32
  }
  func.func @transform_4(%arg0: i32) -> (i32, i32) {
    %c0_i32 = arith.constant 0 : i32
    %c0_i32_0 = arith.constant 0 : i32
    %c0_i32_1 = arith.constant 0 : i32
    return %c0_i32, %c0_i32_0 : i32, i32
  }
  func.func @transform_5(%arg0: i32) -> (i32, i32) {
    %c0_i32 = arith.constant 0 : i32
    %c0_i32_0 = arith.constant 0 : i32
    %c0_i32_1 = arith.constant 0 : i32
    return %c0_i32, %c0_i32_0 : i32, i32
  }
  func.func @transform_6(%arg0: i32) -> (i32, i32, i32) {
    %c0_i32 = arith.constant 0 : i32
    %c0_i32_0 = arith.constant 0 : i32
    %c0_i32_1 = arith.constant 0 : i32
    return %arg0, %c0_i32, %c0_i32_0 : i32, i32, i32
  }
}

</mosaic_0001>

<llo_original>
// kernel: tpu_custom_call.1
$region0: #{tpu_custom_call.1}
  #allocation0 [shape = 'u32[]', space=smem, size = 0x4, offset = 0x4, fixed_abs, tag = 'smem constant byte address 0x4 - core index']
  #allocation1 [shape = 'u32[144,128]{1,0:T(1,128)}', space=vmem, size = 0x12000, scoped, tag = 'internal scratch']
  #allocation2 [shape = 'f32[2,4,512]{2,1,0:T(4,128)}', space=vmem, size = 0x4000, scoped, tag = 'scratch operand']
  %s0 = inlined_call_operand.vmem [shape: f32[2,4,256], index: 0, kind: input, shape index: {}]
  %s1 = inlined_call_operand.hbm [shape: f32[4,9], index: 1, kind: input, shape index: {}]
  %s2 = inlined_call_operand.vmem [shape: f32[3,256], index: 2, kind: input, shape index: {}]
  %s3 = inlined_call_operand.vmem [shape: f32[4,1], index: 3, kind: input, shape index: {}]
  %s4 = inlined_call_operand.vmem [shape: f32[8,4], index: 4, kind: input, shape index: {}]
  %s5 = inlined_call_operand.vmem [shape: f32[8,1], index: 5, kind: input, shape index: {}]
  %s6 = inlined_call_operand.hbm [shape: f32[2,8,256], index: 6, kind: output, shape index: {}]
  %s7 = sld [smem:[#allocation0]]
  $region38: #{tpu_custom_call.1} parent=0
    _
  %s9 = ssub.s32 1, %s7
  %s10 = scalar_select 0, %s9, %s7
  $region1: #{tpu_custom_call.1} parent=0
    #allocation3 [shape = 'u8[2048]{0}', space=vmem, size = 0x800, scoped, tag = 'input window, operand 1, single buffered']
    #allocation4 [shape = 's32[1]{0}', space=sflag, size = 0x4, scoped, tag = 'scoped memory for tpu_custom_call.1']
    #allocation5 [shape = 's32[1]{0}', space=sflag, size = 0x4, scoped, tag = 'scoped memory for tpu_custom_call.1']
    #allocation6 [shape = 'u8[16384]{0}', space=vmem, size = 0x4000, scoped, tag = 'output window, operand 0, single buffered']
    %11 = vsyncpa [#allocation4], 0
    %12 = vsyncpa [#allocation5], 0
    // Predicated region
    $region2: #{tpu_custom_call.1} parent=1 // pred_check
      _
    $region3: #{tpu_custom_call.1} parent=1 // pred_check_branch
      %14 = sbr.rel (0) target = $region5
    $region4: #{tpu_custom_call.1} parent=1 // pred_region
      _
    $region5: #{tpu_custom_call.1} parent=1 // pred_fallthru
      _
    // Predicated region
    $region6: #{tpu_custom_call.1} parent=1 // pred_check
      _
    $region7: #{tpu_custom_call.1} parent=1 // pred_check_branch
      %16 = sbr.rel (0) target = $region9
    $region8: #{tpu_custom_call.1} parent=1 // pred_region
      %s18 = ssub.s32 64, 64
      %19 = vsyncadd [#allocation4], %s18
      %s21 = sshll.u32 [#allocation3], 4
      %s22 = int_to_ptr.vmem [resolvable:$true] %s21
      %24 = dma.hbm_to_vmem [thread:$0]  %s1, 64, %s22, [#allocation4]
    $region9: #{tpu_custom_call.1} parent=1 // pred_fallthru
      _
    // Predicated region
    $region10: #{tpu_custom_call.1} parent=1 // pred_check
      _
    $region11: #{tpu_custom_call.1} parent=1 // pred_check_branch
      %26 = sbr.rel (0) target = $region13
    $region12: #{tpu_custom_call.1} parent=1 // pred_region
      _
    $region13: #{tpu_custom_call.1} parent=1 // pred_fallthru
      _
    // Predicated region
    $region14: #{tpu_custom_call.1} parent=1 // pred_check
      _
    $region15: #{tpu_custom_call.1} parent=1 // pred_check_branch
      %28 = sbr.rel (0) target = $region17
    $region16: #{tpu_custom_call.1} parent=1 // pred_region
      _
    $region17: #{tpu_custom_call.1} parent=1 // pred_fallthru
      _
    // Predicated region
    $region18: #{tpu_custom_call.1} parent=1 // pred_check
      _
    $region19: #{tpu_custom_call.1} parent=1 // pred_check_branch
      %30 = sbr.rel (0) target = $region21
    $region20: #{tpu_custom_call.1} parent=1 // pred_region
      _
    $region21: #{tpu_custom_call.1} parent=1 // pred_fallthru
      _
    // Predicated region
    $region22: #{tpu_custom_call.1} parent=1 // pred_check
      _
    $region23: #{tpu_custom_call.1} parent=1 // pred_check_branch
      %32 = sbr.rel (0) target = $region25
    $region24: #{tpu_custom_call.1} parent=1 // pred_region
      _
    $region25: #{tpu_custom_call.1} parent=1 // pred_fallthru
      _
    // Predicated region
    $region26: #{tpu_custom_call.1} parent=1 // pred_check
      _
    $region27: #{tpu_custom_call.1} parent=1 // pred_check_branch
      %34 = sbr.rel (0) target = $region29
    $region28: #{tpu_custom_call.1} parent=1 // pred_region
      %35 = dma.done [#allocation4], 64
    $region29: #{tpu_custom_call.1} parent=1 // pred_fallthru
      _
    %vm36 = vcmask 1044344
    %37 = vst.msk [vmem:[#allocation2] sm:$0xf] %vm36, 0.0
    %38 = vst.msk [vmem:[#allocation2 + $0x10] sm:$0xf] %vm36, 0.0
    %vm39 = vcmask 134144
    %40 = vst.msk [vmem:[#allocation2 + $0xc] sm:$0xf] %vm39, 0.0
    %41 = vst.msk [vmem:[#allocation2 + $0x1c] sm:$0xf] %vm39, 0.0
    %v42 = vld [vmem:[%s0] sm:$0xff]
    %v43 = vld [vmem:[%s0 + $0x8] sm:$0xff]
    %44 = vst [vmem:[#allocation2 + $0x4] sm:$0xff] %v42
    %45 = vst [vmem:[#allocation2 + $0x14] sm:$0xff] %v43
    %v46 = vld [vmem:[#allocation3] sm:$0xf]
    %v47 = vld [vmem:[#allocation2] sm:$0xff]
    %v48 = vld [vmem:[#allocation2 + $0x8] sm:$0xf]
    %v49 = vld [vmem:[#allocation2 + $0x10] sm:$0xff]
    %v50 = vld [vmem:[#allocation2 + $0x18] sm:$0xf]
    %52 = vset.pattern.permute.xlu0 0
    %53 = vperm.xlu0 %52, %v46
    %v54 = vpop.permute.xlu0 %53
    %v56 = vunpack.c.l.s4 839922192
    %v57 = vunpack.c.0.s8 %v56
    %v58 = vlaneseq
    %v59 = vshrl.u32 %v58, 7
    %v60 = vsub.s32 %v57, %v59
    %v61 = vrot.slane %v54, %v60
    %v63 = vmul.f32 %v47, %v61
    %v64 = vmul.f32 %v48, %v61
    %v65 = vmul.f32 %v49, %v61
    %v66 = vmul.f32 %v50, %v61
    %67 = vset.pattern.permute.xlu0 3
    %68 = vperm.xlu0 %67, %v46
    %v69 = vpop.permute.xlu0 %68
    %v71 = vunpack.c.l.s4 839922192
    %v72 = vunpack.c.0.s8 %v71
    %v73 = vlaneseq
    %v74 = vshrl.u32 %v73, 7
    %v75 = vsub.s32 %v72, %v74
    %v76 = vrot.slane %v69, %v75
    %v78 = vmul.f32 %v47, %v76
    %v79 = vmul.f32 %v48, %v76
    %v80 = vmul.f32 %v49, %v76
    %v81 = vmul.f32 %v50, %v76
    %86 = vrot.lane.b32.xlu0 %v78, 112
    %v87 = vpop.permute.xlu0 %86
    %88 = vrot.lane.b32.xlu0 %v79, 112
    %v89 = vpop.permute.xlu0 %88
    %90 = vrot.lane.b32.xlu0 %v80, 112
    %v91 = vpop.permute.xlu0 %90
    %92 = vrot.lane.b32.xlu0 %v81, 112
    %v93 = vpop.permute.xlu0 %92
    %v94 = vrot.slane %v87, 4
    %v95 = vrot.slane %v89, 4
    %v96 = vrot.slane %v91, 4
    %v97 = vrot.slane %v93, 4
    %vm98 = vcmask 1043456
    %v99 = vsel %vm98, %v94, %v95
    %vm100 = vcmask 916480
    %v101 = vsel %vm100, %v87, %v99
    %v102 = vsel %vm98, %v96, %v97
    %v103 = vsel %vm100, %v91, %v102
    %v108 = vadd.f32 %v63, %v101
    %v109 = vadd.f32 %v64, %v89
    %v110 = vadd.f32 %v65, %v103
    %v111 = vadd.f32 %v66, %v93
    %v112 = vld [vmem:[#allocation2 + $0x4] sm:$0xff]
    %v113 = vld [vmem:[#allocation2 + $0xc] sm:$0xf]
    %v114 = vld [vmem:[#allocation2 + $0x14] sm:$0xff]
    %v115 = vld [vmem:[#allocation2 + $0x1c] sm:$0xf]
    %116 = vset.pattern.permute.xlu0 6
    %117 = vperm.xlu0 %116, %v46
    %v118 = vpop.permute.xlu0 %117
    %v120 = vunpack.c.l.s4 839922192
    %v121 = vunpack.c.0.s8 %v120
    %v122 = vlaneseq
    %v123 = vshrl.u32 %v122, 7
    %v124 = vsub.s32 %v121, %v123
    %v125 = vrot.slane %v118, %v124
    %v127 = vmul.f32 %v112, %v125
    %v128 = vmul.f32 %v113, %v125
    %v129 = vmul.f32 %v114, %v125
    %v130 = vmul.f32 %v115, %v125
    %135 = vrot.lane.b32.xlu0 %v127, 96
    %v136 = vpop.permute.xlu0 %135
    %137 = vrot.lane.b32.xlu0 %v128, 96
    %v138 = vpop.permute.xlu0 %137
    %139 = vrot.lane.b32.xlu0 %v129, 96
    %v140 = vpop.permute.xlu0 %139
    %141 = vrot.lane.b32.xlu0 %v130, 96
    %v142 = vpop.permute.xlu0 %141
    %v143 = vrot.slane %v136, 4
    %v144 = vrot.slane %v140, 4
    %vm145 = vcmask 785408
    %v146 = vsel %vm145, %v143, %v136
    %v147 = vsel %vm145, %v143, %v138
    %v148 = vsel %vm145, %v144, %v140
    %v149 = vsel %vm145, %v144, %v142
    %v154 = vadd.f32 %v108, %v146
    %v155 = vadd.f32 %v109, %v147
    %v156 = vadd.f32 %v110, %v148
    %v157 = vadd.f32 %v111, %v149
    %v158 = vld [vmem:[%s2] ss:$4 sm:$0x3]
    %v160 = vlaneseq
    %v161 = vshrl.u32 %v160, 7
    %v162 = vsub.s32 0, %v161
    %v163 = vrot.slane %v158, %v162
    %v164 = vlaneseq
    %v165 = vshrl.u32 %v164, 7
    %v166 = vsub.s32 1, %v165
    %v167 = vrot.slane %v158, %v166
    %v168 = vcombine.low %v163, %v167
    %169 = vrot.lane.b32.xlu0 %v168, 111
    %v170 = vpop.permute.xlu0 %169
    %v171 = vrot.slane %v170, 4
    %vm172 = vcmask 908288
    %v173 = vsel %vm172, %v171, %v170
    %v176 = vmul.f32 %v154, %v173
    %v177 = vmul.f32 %v155, %v171
    %v178 = vmul.f32 %v156, %v173
    %v179 = vmul.f32 %v157, %v171
    %v180 = vld [vmem:[#allocation2] sm:$0xff]
    %v181 = vld [vmem:[#allocation2 + $0x8] sm:$0xf]
    %v182 = vld [vmem:[#allocation2 + $0x10] sm:$0xff]
    %v183 = vld [vmem:[#allocation2 + $0x18] sm:$0xf]
    %184 = vset.pattern.permute.xlu0 1
    %185 = vperm.xlu0 %184, %v46
    %v186 = vpop.permute.xlu0 %185
    %v188 = vunpack.c.l.s4 839922192
    %v189 = vunpack.c.0.s8 %v188
    %v190 = vlaneseq
    %v191 = vshrl.u32 %v190, 7
    %v192 = vsub.s32 %v189, %v191
    %v193 = vrot.slane %v186, %v192
    %v195 = vmul.f32 %v180, %v193
    %v196 = vmul.f32 %v181, %v193
    %v197 = vmul.f32 %v182, %v193
    %v198 = vmul.f32 %v183, %v193
    %v199 = vld [vmem:[#allocation2 + $0x4] sm:$0xff]
    %v200 = vld [vmem:[#allocation2 + $0x14] sm:$0xff]
    %201 = vset.pattern.permute.xlu0 4
    %202 = vperm.xlu0 %201, %v46
    %v203 = vpop.permute.xlu0 %202
    %v205 = vunpack.c.l.s4 839922192
    %v206 = vunpack.c.0.s8 %v205
    %v207 = vlaneseq
    %v208 = vshrl.u32 %v207, 7
    %v209 = vsub.s32 %v206, %v208
    %v210 = vrot.slane %v203, %v209
    %v212 = vmul.f32 %v199, %v210
    %v213 = vmul.f32 %v200, %v210
    %216 = vrot.lane.b32.xlu0 %v212, 112
    %v217 = vpop.permute.xlu0 %216
    %218 = vrot.lane.b32.xlu0 %v213, 112
    %v219 = vpop.permute.xlu0 %218
    %v220 = vrot.slane %v217, 4
    %v221 = vrot.slane %v219, 4
    %v222 = vsel %vm100, %v220, %v217
    %v223 = vsel %vm100, %v221, %v219
    %v228 = vadd.f32 %v195, %v222
    %v229 = vadd.f32 %v196, %v220
    %v230 = vadd.f32 %v197, %v223
    %v231 = vadd.f32 %v198, %v221
    %v232 = vld [vmem:[#allocation2 + $0x4] sm:$0xff]
    %v233 = vld [vmem:[#allocation2 + $0xc] sm:$0xf]
    %v234 = vld [vmem:[#allocation2 + $0x14] sm:$0xff]
    %v235 = vld [vmem:[#allocation2 + $0x1c] sm:$0xf]
    %236 = vset.pattern.permute.xlu0 7
    %237 = vperm.xlu0 %236, %v46
    %v238 = vpop.permute.xlu0 %237
    %v240 = vunpack.c.l.s4 839922192
    %v241 = vunpack.c.0.s8 %v240
    %v242 = vlaneseq
    %v243 = vshrl.u32 %v242, 7
    %v244 = vsub.s32 %v241, %v243
    %v245 = vrot.slane %v238, %v244
    %v247 = vmul.f32 %v232, %v245
    %v248 = vmul.f32 %v233, %v245
    %v249 = vmul.f32 %v234, %v245
    %v250 = vmul.f32 %v235, %v245
    %255 = vrot.lane.b32.xlu0 %v247, 96
    %v256 = vpop.permute.xlu0 %255
    %257 = vrot.lane.b32.xlu0 %v248, 96
    %v258 = vpop.permute.xlu0 %257
    %259 = vrot.lane.b32.xlu0 %v249, 96
    %v260 = vpop.permute.xlu0 %259
    %261 = vrot.lane.b32.xlu0 %v250, 96
    %v262 = vpop.permute.xlu0 %261
    %v263 = vrot.slane %v256, 4
    %v264 = vrot.slane %v260, 4
    %v265 = vsel %vm145, %v263, %v256
    %v266 = vsel %vm145, %v263, %v258
    %v267 = vsel %vm145, %v264, %v260
    %v268 = vsel %vm145, %v264, %v262
    %v273 = vadd.f32 %v228, %v265
    %v274 = vadd.f32 %v229, %v266
    %v275 = vadd.f32 %v230, %v267
    %v276 = vadd.f32 %v231, %v268
    %281 = vrot.lane.b32.xlu0 %v273, 127
    %v282 = vpop.permute.xlu0 %281
    %283 = vrot.lane.b32.xlu0 %v274, 127
    %v284 = vpop.permute.xlu0 %283
    %285 = vrot.lane.b32.xlu0 %v275, 127
    %v286 = vpop.permute.xlu0 %285
    %287 = vrot.lane.b32.xlu0 %v276, 127
    %v288 = vpop.permute.xlu0 %287
    %v289 = vrot.slane %v282, 4
    %v290 = vrot.slane %v284, 4
    %v291 = vrot.slane %v286, 4
    %v292 = vrot.slane %v288, 4
    %v293 = vsel %vm98, %v289, %v290
    %vm294 = vcmask 1039360
    %v295 = vsel %vm294, %v282, %v293
    %v296 = vsel %vm98, %v291, %v292
    %v297 = vsel %vm294, %v286, %v296
    %v302 = vadd.f32 %v176, %v295
    %v303 = vadd.f32 %v177, %v284
    %v304 = vadd.f32 %v178, %v297
    %v305 = vadd.f32 %v179, %v288
    %306 = vset.pattern.permute.xlu0 2
    %307 = vperm.xlu0 %306, %v46
    %v308 = vpop.permute.xlu0 %307
    %v310 = vunpack.c.l.s4 839922192
    %v311 = vunpack.c.0.s8 %v310
    %v312 = vlaneseq
    %v313 = vshrl.u32 %v312, 7
    %v314 = vsub.s32 %v311, %v313
    %v315 = vrot.slane %v308, %v314
    %v317 = vmul.f32 %v180, %v315
    %v318 = vmul.f32 %v181, %v315
    %v319 = vmul.f32 %v182, %v315
    %v320 = vmul.f32 %v183, %v315
    %321 = vset.pattern.permute.xlu0 5
    %322 = vperm.xlu0 %321, %v46
    %v323 = vpop.permute.xlu0 %322
    %v325 = vunpack.c.l.s4 839922192
    %v326 = vunpack.c.0.s8 %v325
    %v327 = vlaneseq
    %v328 = vshrl.u32 %v327, 7
    %v329 = vsub.s32 %v326, %v328
    %v330 = vrot.slane %v323, %v329
    %v332 = vmul.f32 %v232, %v330
    %v333 = vmul.f32 %v233, %v330
    %v334 = vmul.f32 %v234, %v330
    %v335 = vmul.f32 %v235, %v330
    %340 = vrot.lane.b32.xlu0 %v332, 112
    %v341 = vpop.permute.xlu0 %340
    %342 = vrot.lane.b32.xlu0 %v333, 112
    %v343 = vpop.permute.xlu0 %342
    %344 = vrot.lane.b32.xlu0 %v334, 112
    %v345 = vpop.permute.xlu0 %344
    %346 = vrot.lane.b32.xlu0 %v335, 112
    %v347 = vpop.permute.xlu0 %346
    %v348 = vrot.slane %v341, 4
    %v349 = vrot.slane %v345, 4
    %v350 = vsel %vm100, %v348, %v341
    %v351 = vsel %vm100, %v348, %v343
    %v352 = vsel %vm100, %v349, %v345
    %v353 = vsel %vm100, %v349, %v347
    %v358 = vadd.f32 %v317, %v350
    %v359 = vadd.f32 %v318, %v351
    %v360 = vadd.f32 %v319, %v352
    %v361 = vadd.f32 %v320, %v353
    %362 = vset.pattern.permute.xlu0 8
    %363 = vperm.xlu0 %362, %v46
    %v364 = vpop.permute.xlu0 %363
    %v366 = vunpack.c.l.s4 839922192
    %v367 = vunpack.c.0.s8 %v366
    %v368 = vlaneseq
    %v369 = vshrl.u32 %v368, 7
    %v370 = vsub.s32 %v367, %v369
    %v371 = vrot.slane %v364, %v370
    %v373 = vmul.f32 %v232, %v371
    %v374 = vmul.f32 %v233, %v371
    %v375 = vmul.f32 %v234, %v371
    %v376 = vmul.f32 %v235, %v371
    %381 = vrot.lane.b32.xlu0 %v373, 96
    %v382 = vpop.permute.xlu0 %381
    %383 = vrot.lane.b32.xlu0 %v374, 96
    %v384 = vpop.permute.xlu0 %383
    %385 = vrot.lane.b32.xlu0 %v375, 96
    %v386 = vpop.permute.xlu0 %385
    %387 = vrot.lane.b32.xlu0 %v376, 96
    %v388 = vpop.permute.xlu0 %387
    %v389 = vrot.slane %v382, 4
    %v390 = vrot.slane %v386, 4
    %v391 = vsel %vm145, %v389, %v382
    %v392 = vsel %vm145, %v389, %v384
    %v393 = vsel %vm145, %v390, %v386
    %v394 = vsel %vm145, %v390, %v388
    %v399 = vadd.f32 %v358, %v391
    %v400 = vadd.f32 %v359, %v392
    %v401 = vadd.f32 %v360, %v393
    %v402 = vadd.f32 %v361, %v394
    %s403 = scalar_lea.vmem %s2, 2
    %v404 = vld [vmem:[%s403] ss:$4 sm:$0x3]
    %v406 = vlaneseq
    %v407 = vshrl.u32 %v406, 7
    %v408 = vsub.s32 0, %v407
    %v409 = vrot.slane %v404, %v408
    %v410 = vlaneseq
    %v411 = vshrl.u32 %v410, 7
    %v412 = vsub.s32 1, %v411
    %v413 = vrot.slane %v404, %v412
    %v414 = vcombine.low %v409, %v413
    %415 = vrot.lane.b32.xlu0 %v414, 113
    %v416 = vpop.permute.xlu0 %415
    %v417 = vrot.slane %v416, 4
    %vm418 = vcmask 924672
    %v419 = vsel %vm418, %v417, %v416
    %v422 = vmul.f32 %v399, %v419
    %v423 = vmul.f32 %v400, %v417
    %v424 = vmul.f32 %v401, %v419
    %v425 = vmul.f32 %v402, %v417
    %430 = vrot.lane.b32.xlu0 %v422, 126
    %v431 = vpop.permute.xlu0 %430
    %432 = vrot.lane.b32.xlu0 %v423, 126
    %v433 = vpop.permute.xlu0 %432
    %434 = vrot.lane.b32.xlu0 %v424, 126
    %v435 = vpop.permute.xlu0 %434
    %436 = vrot.lane.b32.xlu0 %v425, 126
    %v437 = vpop.permute.xlu0 %436
    %v438 = vrot.slane %v431, 4
    %v439 = vrot.slane %v433, 4
    %v440 = vrot.slane %v435, 4
    %v441 = vrot.slane %v437, 4
    %v442 = vsel %vm98, %v438, %v439
    %vm443 = vcmask 1031168
    %v444 = vsel %vm443, %v431, %v442
    %v445 = vsel %vm98, %v440, %v441
    %v446 = vsel %vm443, %v435, %v445
    %v451 = vadd.f32 %v302, %v444
    %v452 = vadd.f32 %v303, %v433
    %v453 = vadd.f32 %v304, %v446
    %v454 = vadd.f32 %v305, %v437
    %v455 = vld [vmem:[%s3] sm:$0xf]
    %457 = vset.pattern.permute.xlu0 0
    %458 = vperm.xlu0 %457, %v455
    %v459 = vpop.permute.xlu0 %458
    %v461 = vunpack.c.l.s4 839922192
    %v462 = vunpack.c.0.s8 %v461
    %v463 = vlaneseq
    %v464 = vshrl.u32 %v463, 7
    %v465 = vsub.s32 %v462, %v464
    %v466 = vrot.slane %v459, %v465
    %v468 = vadd.f32 %v451, %v466
    %v469 = vadd.f32 %v452, %v466
    %v470 = vadd.f32 %v453, %v466
    %v471 = vadd.f32 %v454, %v466
    %v472 = vmax.f32 %v468, 0.0
    %v473 = vmax.f32 %v469, 0.0
    %v474 = vmax.f32 %v470, 0.0
    %v475 = vmax.f32 %v471, 0.0
    %v476 = vmin.f32 %v472, 6.0
    %v477 = vmin.f32 %v473, 6.0
    %v478 = vmin.f32 %v474, 6.0
    %v479 = vmin.f32 %v475, 6.0
    %v480 = vld [vmem:[%s4] sm:$0xff]
    %482 = vset.pattern.permute.xlu0 0
    %483 = vperm.xlu0 %482, %v480
    %v484 = vpop.permute.xlu0 %483
    %v490 = vlaneseq
    %v491 = vshrl.u32 %v490, 7
    %v492 = vsub.s32 0, %v491
    %v493 = vrot.slane %v476, %v492
    %v494 = vlaneseq
    %v495 = vshrl.u32 %v494, 7
    %v496 = vsub.s32 4, %v495
    %v497 = vrot.slane %v476, %v496
    %v498 = vlaneseq
    %v499 = vshrl.u32 %v498, 7
    %v500 = vsub.s32 0, %v499
    %v501 = vrot.slane %v477, %v500
    %v502 = vlaneseq
    %v503 = vshrl.u32 %v502, 7
    %v504 = vsub.s32 0, %v503
    %v505 = vrot.slane %v478, %v504
    %v506 = vlaneseq
    %v507 = vshrl.u32 %v506, 7
    %v508 = vsub.s32 4, %v507
    %v509 = vrot.slane %v478, %v508
    %v510 = vlaneseq
    %v511 = vshrl.u32 %v510, 7
    %v512 = vsub.s32 0, %v511
    %v513 = vrot.slane %v479, %v512
    %v520 = vlaneseq
    %v521 = vshrl.u32 %v520, 7
    %v522 = vsub.s32 0, %v521
    %v523 = vrot.slane %v493, %v522
    %v524 = vlaneseq
    %v525 = vshrl.u32 %v524, 7
    %v526 = vsub.s32 0, %v525
    %v527 = vrot.slane %v497, %v526
    %v528 = vlaneseq
    %v529 = vshrl.u32 %v528, 7
    %v530 = vsub.s32 0, %v529
    %v531 = vrot.slane %v501, %v530
    %v532 = vlaneseq
    %v533 = vshrl.u32 %v532, 7
    %v534 = vsub.s32 0, %v533
    %v535 = vrot.slane %v505, %v534
    %v536 = vlaneseq
    %v537 = vshrl.u32 %v536, 7
    %v538 = vsub.s32 0, %v537
    %v539 = vrot.slane %v509, %v538
    %v540 = vlaneseq
    %v541 = vshrl.u32 %v540, 7
    %v542 = vsub.s32 0, %v541
    %v543 = vrot.slane %v513, %v542
    %v544 = vmul.f32 %v484, %v523
    %v545 = vmul.f32 %v484, %v527
    %v546 = vmul.f32 %v484, %v531
    %v547 = vmul.f32 %v484, %v535
    %v548 = vmul.f32 %v484, %v539
    %v549 = vmul.f32 %v484, %v543
    %550 = vset.pattern.permute.xlu0 1
    %551 = vperm.xlu0 %550, %v480
    %v552 = vpop.permute.xlu0 %551
    %v554 = vlaneseq
    %v555 = vshrl.u32 %v554, 7
    %v556 = vsub.s32 1, %v555
    %v557 = vrot.slane %v476, %v556
    %v558 = vlaneseq
    %v559 = vshrl.u32 %v558, 7
    %v560 = vsub.s32 5, %v559
    %v561 = vrot.slane %v476, %v560
    %v562 = vlaneseq
    %v563 = vshrl.u32 %v562, 7
    %v564 = vsub.s32 1, %v563
    %v565 = vrot.slane %v477, %v564
    %v566 = vlaneseq
    %v567 = vshrl.u32 %v566, 7
    %v568 = vsub.s32 1, %v567
    %v569 = vrot.slane %v478, %v568
    %v570 = vlaneseq
    %v571 = vshrl.u32 %v570, 7
    %v572 = vsub.s32 5, %v571
    %v573 = vrot.slane %v478, %v572
    %v574 = vlaneseq
    %v575 = vshrl.u32 %v574, 7
    %v576 = vsub.s32 1, %v575
    %v577 = vrot.slane %v479, %v576
    %v584 = vlaneseq
    %v585 = vshrl.u32 %v584, 7
    %v586 = vsub.s32 1, %v585
    %v587 = vrot.slane %v557, %v586
    %v588 = vlaneseq
    %v589 = vshrl.u32 %v588, 7
    %v590 = vsub.s32 1, %v589
    %v591 = vrot.slane %v561, %v590
    %v592 = vlaneseq
    %v593 = vshrl.u32 %v592, 7
    %v594 = vsub.s32 1, %v593
    %v595 = vrot.slane %v565, %v594
    %v596 = vlaneseq
    %v597 = vshrl.u32 %v596, 7
    %v598 = vsub.s32 1, %v597
    %v599 = vrot.slane %v569, %v598
    %v600 = vlaneseq
    %v601 = vshrl.u32 %v600, 7
    %v602 = vsub.s32 1, %v601
    %v603 = vrot.slane %v573, %v602
    %v604 = vlaneseq
    %v605 = vshrl.u32 %v604, 7
    %v606 = vsub.s32 1, %v605
    %v607 = vrot.slane %v577, %v606
    %v608 = vmul.f32 %v552, %v587
    %v609 = vmul.f32 %v552, %v591
    %v610 = vmul.f32 %v552, %v595
    %v611 = vmul.f32 %v552, %v599
    %v612 = vmul.f32 %v552, %v603
    %v613 = vmul.f32 %v552, %v607
    %v614 = vadd.f32 %v544, %v608
    %v615 = vadd.f32 %v545, %v609
    %v616 = vadd.f32 %v546, %v610
    %v617 = vadd.f32 %v547, %v611
    %v618 = vadd.f32 %v548, %v612
    %v619 = vadd.f32 %v549, %v613
    %620 = vset.pattern.permute.xlu0 2
    %621 = vperm.xlu0 %620, %v480
    %v622 = vpop.permute.xlu0 %621
    %v624 = vlaneseq
    %v625 = vshrl.u32 %v624, 7
    %v626 = vsub.s32 2, %v625
    %v627 = vrot.slane %v476, %v626
    %v628 = vlaneseq
    %v629 = vshrl.u32 %v628, 7
    %v630 = vsub.s32 6, %v629
    %v631 = vrot.slane %v476, %v630
    %v632 = vlaneseq
    %v633 = vshrl.u32 %v632, 7
    %v634 = vsub.s32 2, %v633
    %v635 = vrot.slane %v477, %v634
    %v636 = vlaneseq
    %v637 = vshrl.u32 %v636, 7
    %v638 = vsub.s32 2, %v637
    %v639 = vrot.slane %v478, %v638
    %v640 = vlaneseq
    %v641 = vshrl.u32 %v640, 7
    %v642 = vsub.s32 6, %v641
    %v643 = vrot.slane %v478, %v642
    %v644 = vlaneseq
    %v645 = vshrl.u32 %v644, 7
    %v646 = vsub.s32 2, %v645
    %v647 = vrot.slane %v479, %v646
    %v654 = vlaneseq
    %v655 = vshrl.u32 %v654, 7
    %v656 = vsub.s32 2, %v655
    %v657 = vrot.slane %v627, %v656
    %v658 = vlaneseq
    %v659 = vshrl.u32 %v658, 7
    %v660 = vsub.s32 2, %v659
    %v661 = vrot.slane %v631, %v660
    %v662 = vlaneseq
    %v663 = vshrl.u32 %v662, 7
    %v664 = vsub.s32 2, %v663
    %v665 = vrot.slane %v635, %v664
    %v666 = vlaneseq
    %v667 = vshrl.u32 %v666, 7
    %v668 = vsub.s32 2, %v667
    %v669 = vrot.slane %v639, %v668
    %v670 = vlaneseq
    %v671 = vshrl.u32 %v670, 7
    %v672 = vsub.s32 2, %v671
    %v673 = vrot.slane %v643, %v672
    %v674 = vlaneseq
    %v675 = vshrl.u32 %v674, 7
    %v676 = vsub.s32 2, %v675
    %v677 = vrot.slane %v647, %v676
    %v678 = vmul.f32 %v622, %v657
    %v679 = vmul.f32 %v622, %v661
    %v680 = vmul.f32 %v622, %v665
    %v681 = vmul.f32 %v622, %v669
    %v682 = vmul.f32 %v622, %v673
    %v683 = vmul.f32 %v622, %v677
    %v684 = vadd.f32 %v614, %v678
    %v685 = vadd.f32 %v615, %v679
    %v686 = vadd.f32 %v616, %v680
    %v687 = vadd.f32 %v617, %v681
    %v688 = vadd.f32 %v618, %v682
    %v689 = vadd.f32 %v619, %v683
    %690 = vset.pattern.permute.xlu0 3
    %691 = vperm.xlu0 %690, %v480
    %v692 = vpop.permute.xlu0 %691
    %v694 = vlaneseq
    %v695 = vshrl.u32 %v694, 7
    %v696 = vsub.s32 3, %v695
    %v697 = vrot.slane %v476, %v696
    %v698 = vlaneseq
    %v699 = vshrl.u32 %v698, 7
    %v700 = vsub.s32 7, %v699
    %v701 = vrot.slane %v476, %v700
    %v702 = vlaneseq
    %v703 = vshrl.u32 %v702, 7
    %v704 = vsub.s32 3, %v703
    %v705 = vrot.slane %v477, %v704
    %v706 = vlaneseq
    %v707 = vshrl.u32 %v706, 7
    %v708 = vsub.s32 3, %v707
    %v709 = vrot.slane %v478, %v708
    %v710 = vlaneseq
    %v711 = vshrl.u32 %v710, 7
    %v712 = vsub.s32 7, %v711
    %v713 = vrot.slane %v478, %v712
    %v714 = vlaneseq
    %v715 = vshrl.u32 %v714, 7
    %v716 = vsub.s32 3, %v715
    %v717 = vrot.slane %v479, %v716
    %v724 = vlaneseq
    %v725 = vshrl.u32 %v724, 7
    %v726 = vsub.s32 3, %v725
    %v727 = vrot.slane %v697, %v726
    %v728 = vlaneseq
    %v729 = vshrl.u32 %v728, 7
    %v730 = vsub.s32 3, %v729
    %v731 = vrot.slane %v701, %v730
    %v732 = vlaneseq
    %v733 = vshrl.u32 %v732, 7
    %v734 = vsub.s32 3, %v733
    %v735 = vrot.slane %v705, %v734
    %v736 = vlaneseq
    %v737 = vshrl.u32 %v736, 7
    %v738 = vsub.s32 3, %v737
    %v739 = vrot.slane %v709, %v738
    %v740 = vlaneseq
    %v741 = vshrl.u32 %v740, 7
    %v742 = vsub.s32 3, %v741
    %v743 = vrot.slane %v713, %v742
    %v744 = vlaneseq
    %v745 = vshrl.u32 %v744, 7
    %v746 = vsub.s32 3, %v745
    %v747 = vrot.slane %v717, %v746
    %v748 = vmul.f32 %v692, %v727
    %v749 = vmul.f32 %v692, %v731
    %v750 = vmul.f32 %v692, %v735
    %v751 = vmul.f32 %v692, %v739
    %v752 = vmul.f32 %v692, %v743
    %v753 = vmul.f32 %v692, %v747
    %v754 = vadd.f32 %v684, %v748
    %v755 = vadd.f32 %v685, %v749
    %v756 = vadd.f32 %v686, %v750
    %v757 = vadd.f32 %v687, %v751
    %v758 = vadd.f32 %v688, %v752
    %v759 = vadd.f32 %v689, %v753
    %v760 = vld [vmem:[%s5] sm:$0xff]
    %762 = vset.pattern.permute.xlu0 0
    %763 = vperm.xlu0 %762, %v760
    %v764 = vpop.permute.xlu0 %763
    %v766 = vadd.f32 %v754, %v764
    %v767 = vadd.f32 %v755, %v764
    %v768 = vadd.f32 %v756, %v764
    %v769 = vadd.f32 %v757, %v764
    %v770 = vadd.f32 %v758, %v764
    %v771 = vadd.f32 %v759, %v764
    %v772 = vmax.f32 %v766, 0.0
    %v773 = vmax.f32 %v767, 0.0
    %v774 = vmax.f32 %v768, 0.0
    %v775 = vmax.f32 %v769, 0.0
    %v776 = vmax.f32 %v770, 0.0
    %v777 = vmax.f32 %v771, 0.0
    %v778 = vmin.f32 %v772, 6.0
    %v779 = vmin.f32 %v773, 6.0
    %v780 = vmin.f32 %v774, 6.0
    %v781 = vmin.f32 %v775, 6.0
    %v782 = vmin.f32 %v776, 6.0
    %v783 = vmin.f32 %v777, 6.0
    %790 = vrot.lane.b32.xlu0 %v778, 17
    %v791 = vpop.permute.xlu0 %790
    %792 = vrot.lane.b32.xlu0 %v779, 17
    %v793 = vpop.permute.xlu0 %792
    %794 = vrot.lane.b32.xlu0 %v780, 17
    %v795 = vpop.permute.xlu0 %794
    %796 = vrot.lane.b32.xlu0 %v781, 17
    %v797 = vpop.permute.xlu0 %796
    %798 = vrot.lane.b32.xlu0 %v782, 17
    %v799 = vpop.permute.xlu0 %798
    %800 = vrot.lane.b32.xlu0 %v783, 17
    %v801 = vpop.permute.xlu0 %800
    %vm802 = vcmask 138240
    %v803 = vsel %vm802, %v791, %v793
    %v804 = vsel %vm802, %v793, %v795
    %v805 = vsel %vm802, %v797, %v799
    %v806 = vsel %vm802, %v799, %v801
    %811 = vst [vmem:[#allocation6] sm:$0xff] %v803
    %812 = vst [vmem:[#allocation6 + $0x8] sm:$0xff] %v804
    %813 = vst [vmem:[#allocation6 + $0x10] sm:$0xff] %v805
    %814 = vst [vmem:[#allocation6 + $0x18] sm:$0xff] %v806
    // Predicated region
    $region30: #{tpu_custom_call.1} parent=1 // pred_check
      _
    $region31: #{tpu_custom_call.1} parent=1 // pred_check_branch
      %816 = sbr.rel (0) target = $region33
    $region32: #{tpu_custom_call.1} parent=1 // pred_region
      %s818 = ssub.s32 512, 512
      %819 = vsyncadd [#allocation5], %s818
      %s820 = sshll.u32 [#allocation6], 4
      %s821 = int_to_ptr.vmem [resolvable:$true] %s820
      %826 = dma.vmem_to_hbm [thread:$0]  %s821, 512, %s6, [#allocation5], 256, 256, 16
    $region33: #{tpu_custom_call.1} parent=1 // pred_fallthru
      _
    // Predicated region
    $region34: #{tpu_custom_call.1} parent=1 // pred_check
      _
    $region35: #{tpu_custom_call.1} parent=1 // pred_check_branch
      %828 = sbr.rel (0) target = $region37
    $region36: #{tpu_custom_call.1} parent=1 // pred_region
      %829 = dma.done [#allocation5], 512
    $region37: #{tpu_custom_call.1} parent=1 // pred_fallthru
      _
    %830 = vsyncpa [#allocation4], 1
    %831 = vsyncpa [#allocation5], 1

</llo_original>
